<compile_context>
chip_gen: v7x
topology: tpu7x:2x2x1
jax: 0.10.0
libtpu: 0.0.40
codegen_flags: <defaults>
</compile_context>

<pallas_src>
import jax
import jax.numpy as jnp
from jax.experimental import pallas as pl
from jax.experimental.pallas import tpu as pltpu


def _round_up(x, m):
    return ((x + m - 1) // m) * m


def _cdiv(a, b):
    return -(-a // b)


def _pad2(x, target_shape):
    return jnp.pad(x, [(0, t - s) for t, s in zip(target_shape, x.shape)])


def _fused_kernel(te_ref, qe_ref, w1a_ref, w1b_ref, b1_ref, w2_ref, b2_ref, out_ref):
    j = pl.program_id(0)
    # fc1 + ReLU: cat((te, qe)) @ W1.T == te @ W1a + qe @ W1b (split matmul; the
    # concat costs no data movement).  Recomputed per vocab tile: a tiny matmul
    # hidden under the w2 DMA, keeping the grid axis free of cross-step state.
    h = (jnp.dot(te_ref[...], w1a_ref[...], preferred_element_type=jnp.float32)
         + jnp.dot(qe_ref[...], w1b_ref[...], preferred_element_type=jnp.float32)
         + b1_ref[...])                                   # (B_pad, H_pad) f32
    h = jnp.maximum(h, 0.0).astype(w2_ref.dtype)          # ReLU in f32, bf16 for MXU
    # fc2 over this vocab tile; b2 is a VMEM resident, indexed by the grid id.
    out = jnp.dot(h, w2_ref[...], preferred_element_type=jnp.float32) + b2_ref[j]
    out_ref[...] = out.astype(out_ref.dtype)


def _fc2_kernel(h_ref, w2_ref, b2_ref, out_ref):
    # fc1 already hoisted to the wrapper (large-shape path): fc2-only tile.
    j = pl.program_id(0)
    out = jnp.dot(h_ref[...], w2_ref[...], preferred_element_type=jnp.float32) + b2_ref[j]
    out_ref[...] = out.astype(out_ref.dtype)


def qa_forward(text_ids, question_ids, params, *, out_dtype=jnp.bfloat16):
    emb, w1a, w1b = params["emb"], params["w1a"], params["w1b"]
    b1, w2, b2 = params["b1"], params["w2"], params["b2"]

    B = text_ids.shape[0]
    E = emb.shape[1]
    H = w2.shape[0]
    V = w2.shape[1]

    # Glue: embedding gather + token mean, pre-reduced so the kernel only sees
    # (B, E) activations instead of (B, T, E).
    te = jnp.take(emb, text_ids, axis=0).mean(axis=1)        # (B, E) f32
    qe = jnp.take(emb, question_ids, axis=0).mean(axis=1)    # (B, E) f32

    out_itemsize = jnp.dtype(out_dtype).itemsize

    # --- hardware tile padding (zero padding keeps the math exact) ---
    B_pad = _round_up(B, 8) if B <= 8 else _round_up(B, 16)  # bf16 packs 16 sublanes
    E_pad = _round_up(E, 128)
    H_pad = _round_up(H, 128)

    # --- adaptive vocab tile: target ~2 MiB bf16 w2 slabs, clamped to [512, 8192]
    #     lanes, to a double-buffered VMEM budget that fits v7x (64 MiB/TC), and
    #     to the 128-rounded vocab.  Tiles are near-equal to avoid padding V up
    #     to a multiple of TN. ---
    V128 = _round_up(V, 128)
    tn_target = max(512, min(8192, _round_up((2 << 20) // (H_pad * 2), 128)))
    per_col_bytes = 2 * (H_pad * 2 + B_pad * out_itemsize)   # dbl-buffered w2 + out
    tn_vmem_cap = max(128, ((24 << 20) // per_col_bytes) // 128 * 128)
    tn_target = min(tn_target, tn_vmem_cap, V128)
    n_tiles = _cdiv(V128, tn_target)
    if V128 >= 256:
        n_tiles = max(n_tiles, 2)          # keep both v7x TensorCores busy
    TN = _round_up(_cdiv(V128, n_tiles), 128)
    V_pad = n_tiles * TN

    # --- operands (bf16 MXU inputs, f32 biases / accumulation) ---
    te_p = _pad2(te, (B_pad, E_pad)).astype(jnp.bfloat16)
    qe_p = _pad2(qe, (B_pad, E_pad)).astype(jnp.bfloat16)
    w1a_p = _pad2(w1a, (E_pad, H_pad)).astype(jnp.bfloat16)
    w1b_p = _pad2(w1b, (E_pad, H_pad)).astype(jnp.bfloat16)
    b1_p = _pad2(b1, (1, H_pad))                              # f32

    # w2 pre-tiled once to a contiguous (n_tiles, H_pad, TN) slab: one large DMA
    # per grid step instead of H_pad strided rows.
    # TODO(synk): optional int8 (v5e/v6e) / fp8-e4m3 (v7x) w2 quantization with an
    # f32 scale in the epilogue would halve the dominant HBM stream again.
    w2_p = (_pad2(w2, (H_pad, V_pad)).astype(jnp.bfloat16)
            .reshape(H_pad, n_tiles, TN).transpose(1, 0, 2))
    # b2 pre-tiled to (n_tiles, 1, TN) f32, kept whole-array VMEM resident.
    b2_p = _pad2(b2, (1, V_pad)).reshape(1, n_tiles, TN).transpose(1, 0, 2)

    def resident(shape):
        return pl.BlockSpec(shape, lambda j, _n=len(shape): (0,) * _n)

    w2_spec = pl.BlockSpec((None, H_pad, TN), lambda j: (j, 0, 0))  # squeezed tile idx
    b2_spec = resident((n_tiles, 1, TN))

    fuse_fc1 = (B < 64) and (H < 2048)   # recompute is free under the w2 DMA here
    if fuse_fc1:
        kernel = _fused_kernel
        operands = (te_p, qe_p, w1a_p, w1b_p, b1_p, w2_p, b2_p)
        in_specs = [
            resident((B_pad, E_pad)),     # te
            resident((B_pad, E_pad)),     # qe
            resident((E_pad, H_pad)),     # w1a
            resident((E_pad, H_pad)),     # w1b
            resident((1, H_pad)),         # b1
            w2_spec,                      # w2 vocab tile
            b2_spec,                      # b2 (resident, indexed in-kernel)
        ]
        flops = n_tiles * 4 * B_pad * E_pad * H_pad + 2 * B_pad * H_pad * V_pad
        act_bytes = (int(te_p.size) + int(qe_p.size) + int(w1a_p.size)
                     + int(w1b_p.size)) * 2 + int(b1_p.size) * 4
    else:
        # Large-shape path: hoist fc1+ReLU out of the per-tile recompute.
        x = jnp.concatenate([te, qe], axis=1)
        w1 = jnp.concatenate([w1a, w1b], axis=0)
        h = jnp.maximum(x @ w1 + b1, 0.0)
        h_p = _pad2(h, (B_pad, H_pad)).astype(jnp.bfloat16)
        kernel = _fc2_kernel
        operands = (h_p, w2_p, b2_p)
        in_specs = [resident((B_pad, H_pad)), w2_spec, b2_spec]
        flops = 2 * B_pad * H_pad * V_pad
        act_bytes = int(h_p.size) * 2

    # Residents are loaded once; w2 / b2 / out streamed once.
    bytes_accessed = (act_bytes + int(w2_p.size) * 2 + int(b2_p.size) * 4
                      + B_pad * V_pad * out_itemsize)
    cost = pl.CostEstimate(flops=int(flops), transcendentals=0,
                           bytes_accessed=int(bytes_accessed))

    # VMEM: residents (x2 buffers, conservatively) + double-buffered w2/out tiles
    # + slack; clamp to 48 MiB (fits v7x's 64 MiB/TC, ample headroom on v6e/v5e).
    resident_bytes = act_bytes + int(b2_p.size) * 4
    tile_bytes = 2 * (H_pad * TN * 2 + B_pad * TN * out_itemsize)
    vmem_limit = int(min(max(2 * resident_bytes + tile_bytes + (4 << 20), 32 << 20),
                         48 << 20))

    out_p = pl.pallas_call(
        kernel,
        out_shape=jax.ShapeDtypeStruct((B_pad, V_pad), out_dtype),
        grid=(n_tiles,),
        in_specs=in_specs,
        out_specs=pl.BlockSpec((B_pad, TN), lambda j: (0, j)),
        compiler_params=pltpu.CompilerParams(
            dimension_semantics=("parallel",),
            vmem_limit_bytes=vmem_limit,
        ),
        cost_estimate=cost,
    )(*operands)

    return out_p[:B, :V]


def init_params(key, vocab_size, embed_dim, hidden_dim):
    k_emb, k_w1, k_b1, k_w2, k_b2 = jax.random.split(key, 5)
    emb = jax.random.normal(k_emb, (vocab_size, embed_dim), jnp.float32)
    # PyTorch fc1.weight: (hidden_dim, 2*embed_dim).  Store transposed, split
    # into the text half (rows 0:E) and question half (rows E:2E).
    w1_t = jax.random.normal(k_w1, (2 * embed_dim, hidden_dim), jnp.float32) * 0.1
    b1 = jax.random.normal(k_b1, (1, hidden_dim), jnp.float32) * 0.1
    w2_t = jax.random.normal(k_w2, (hidden_dim, vocab_size), jnp.float32) * 0.1
    b2 = jax.random.normal(k_b2, (1, vocab_size), jnp.float32) * 0.1
    return {
        "emb": emb,
        "w1a": w1_t[:embed_dim, :],
        "w1b": w1_t[embed_dim:, :],
        "b1": b1,
        "w2": w2_t,
        "b2": b2,
    }


def qa_reference(text_ids, question_ids, params):
    te = jnp.take(params["emb"], text_ids, axis=0).mean(axis=1)
    qe = jnp.take(params["emb"], question_ids, axis=0).mean(axis=1)
    x = jnp.concatenate([te, qe], axis=1)
    w1 = jnp.concatenate([params["w1a"], params["w1b"]], axis=0)
    h = jnp.maximum(x @ w1 + params["b1"], 0.0)
    return h @ params["w2"] + params["b2"]


if __name__ == "__main__":
    vocab_size, embed_dim, hidden_dim = 32, 10, 16
    batch, text_len, question_len = 2, 8, 6

    key = jax.random.PRNGKey(0)
    k_params, k_text, k_q = jax.random.split(key, 3)
    params = init_params(k_params, vocab_size, embed_dim, hidden_dim)

    text_ids = jax.random.randint(k_text, (batch, text_len), 0, vocab_size, jnp.int32)
    question_ids = jax.random.randint(k_q, (batch, question_len), 0, vocab_size, jnp.int32)

    qa_fwd = jax.jit(qa_forward)
    out = qa_fwd(text_ids, question_ids, params)
    out = jax.block_until_ready(out)

    ref = qa_reference(text_ids, question_ids, params)
    assert out.shape == (batch, vocab_size)
    # bf16 matmul operands + bf16 output (f32 accumulate) -> loosened tolerance.
    err = float(jnp.max(jnp.abs(out.astype(jnp.float32) - ref)))
    assert err < 3e-2, err

    print("KERNEL_OK")
</pallas_src>

<mosaic_0001>
module attributes {stable_mosaic.version = 11 : i64} {
  func.func @_fused_kernel(%arg0: i32, %arg1: memref<8x128xbf16, #tpu.memory_space<vmem>>, %arg2: memref<8x128xbf16, #tpu.memory_space<vmem>>, %arg3: memref<128x128xbf16, #tpu.memory_space<vmem>>, %arg4: memref<128x128xbf16, #tpu.memory_space<vmem>>, %arg5: memref<1x128xf32, #tpu.memory_space<vmem>>, %arg6: memref<1x128x128xbf16, #tpu.memory_space<vmem>>, %arg7: memref<1x1x128xf32, #tpu.memory_space<vmem>>, %arg8: memref<8x128xbf16, #tpu.memory_space<vmem>>) attributes {dimension_semantics = [#tpu.dimension_semantics<parallel>], iteration_bounds = array<i64: 1>, scalar_prefetch = 0 : i64, scratch_operands = 0 : i64, tpu.core_type = #tpu.core_type<tc>, window_params = [{pipeline_mode = #tpu.pipeline_mode<synchronous>, transform_indices = @transform_0, window_bounds = array<i64: 8, 128>}, {pipeline_mode = #tpu.pipeline_mode<synchronous>, transform_indices = @transform_1, window_bounds = array<i64: 8, 128>}, {pipeline_mode = #tpu.pipeline_mode<synchronous>, transform_indices = @transform_2, window_bounds = array<i64: 128, 128>}, {pipeline_mode = #tpu.pipeline_mode<synchronous>, transform_indices = @transform_3, window_bounds = array<i64: 128, 128>}, {pipeline_mode = #tpu.pipeline_mode<synchronous>, transform_indices = @transform_4, window_bounds = array<i64: 1, 128>}, {transform_indices = @transform_5, window_bounds = array<i64: 1, 128, 128>}, {pipeline_mode = #tpu.pipeline_mode<synchronous>, transform_indices = @transform_6, window_bounds = array<i64: 1, 1, 128>}, {transform_indices = @transform_7, window_bounds = array<i64: 8, 128>}]} {
    %c0 = arith.constant 0 : index
    %c0_0 = arith.constant 0 : index
    %0 = vector.load %arg1[%c0, %c0_0] : memref<8x128xbf16, #tpu.memory_space<vmem>>, vector<8x128xbf16>
    %c0_1 = arith.constant 0 : index
    %c0_2 = arith.constant 0 : index
    %1 = vector.load %arg3[%c0_1, %c0_2] : memref<128x128xbf16, #tpu.memory_space<vmem>>, vector<128x128xbf16>
    %cst = arith.constant dense<0.000000e+00> : vector<8x128xf32>
    %2 = tpu.matmul %0, %1, %cst {dimension_numbers = #tpu.dot_dimension_numbers<[1], [0], [0], [1], [0, 0, 1, 1], [], []>} : vector<8x128xbf16>, vector<128x128xbf16>, vector<8x128xf32> -> vector<8x128xf32>
    %c0_3 = arith.constant 0 : index
    %c0_4 = arith.constant 0 : index
    %3 = vector.load %arg2[%c0_3, %c0_4] : memref<8x128xbf16, #tpu.memory_space<vmem>>, vector<8x128xbf16>
    %c0_5 = arith.constant 0 : index
    %c0_6 = arith.constant 0 : index
    %4 = vector.load %arg4[%c0_5, %c0_6] : memref<128x128xbf16, #tpu.memory_space<vmem>>, vector<128x128xbf16>
    %cst_7 = arith.constant dense<0.000000e+00> : vector<8x128xf32>
    %5 = tpu.matmul %3, %4, %cst_7 {dimension_numbers = #tpu.dot_dimension_numbers<[1], [0], [0], [1], [0, 0, 1, 1], [], []>} : vector<8x128xbf16>, vector<128x128xbf16>, vector<8x128xf32> -> vector<8x128xf32>
    %6 = arith.addf %2, %5 : vector<8x128xf32>
    %c0_8 = arith.constant 0 : index
    %c0_9 = arith.constant 0 : index
    %7 = vector.load %arg5[%c0_8, %c0_9] : memref<1x128xf32, #tpu.memory_space<vmem>>, vector<1x128xf32>
    %8 = vector.broadcast %7 : vector<1x128xf32> to vector<8x128xf32>
    %9 = arith.addf %6, %8 : vector<8x128xf32>
    %cst_10 = arith.constant 0.000000e+00 : f32
    %10 = vector.broadcast %cst_10 : f32 to vector<8x128xf32>
    %11 = arith.maximumf %9, %10 : vector<8x128xf32>
    %12 = arith.truncf %11 : vector<8x128xf32> to vector<8x128xbf16>
    %c0_11 = arith.constant 0 : index
    %c0_12 = arith.constant 0 : index
    %c0_13 = arith.constant 0 : index
    %13 = vector.load %arg6[%c0_11, %c0_12, %c0_13] : memref<1x128x128xbf16, #tpu.memory_space<vmem>>, vector<1x128x128xbf16>
    %14 = vector.shape_cast %13 : vector<1x128x128xbf16> to vector<128x128xbf16>
    %cst_14 = arith.constant dense<0.000000e+00> : vector<8x128xf32>
    %15 = tpu.matmul %12, %14, %cst_14 {dimension_numbers = #tpu.dot_dimension_numbers<[1], [0], [0], [1], [0, 0, 1, 1], [], []>} : vector<8x128xbf16>, vector<128x128xbf16>, vector<8x128xf32> -> vector<8x128xf32>
    %16 = arith.index_cast %arg0 : i32 to index
    %c0_15 = arith.constant 0 : index
    %c0_16 = arith.constant 0 : index
    %17 = vector.load %arg7[%16, %c0_15, %c0_16] : memref<1x1x128xf32, #tpu.memory_space<vmem>>, vector<1x1x128xf32>
    %18 = vector.shape_cast %17 : vector<1x1x128xf32> to vector<1x128xf32>
    %19 = vector.broadcast %18 : vector<1x128xf32> to vector<8x128xf32>
    %20 = arith.addf %15, %19 : vector<8x128xf32>
    %21 = arith.truncf %20 : vector<8x128xf32> to vector<8x128xbf16>
    %c0_17 = arith.constant 0 : index
    %c0_18 = arith.constant 0 : index
    %22 = vector.load %arg8[%c0_17, %c0_18] : memref<8x128xbf16, #tpu.memory_space<vmem>>, vector<8x128xbf16>
    tpu.vector_store %arg8[%c0_17, %c0_18], %21 {strides = array<i32>} : memref<8x128xbf16, #tpu.memory_space<vmem>>, vector<8x128xbf16>,
    return
  }
  func.func @transform_0(%arg0: i32) -> (i32, i32) {
    %c0_i32 = arith.constant 0 : i32
    %c0_i32_0 = arith.constant 0 : i32
    %c0_i32_1 = arith.constant 0 : i32
    return %c0_i32, %c0_i32_0 : i32, i32
  }
  func.func @transform_1(%arg0: i32) -> (i32, i32) {
    %c0_i32 = arith.constant 0 : i32
    %c0_i32_0 = arith.constant 0 : i32
    %c0_i32_1 = arith.constant 0 : i32
    return %c0_i32, %c0_i32_0 : i32, i32
  }
  func.func @transform_2(%arg0: i32) -> (i32, i32) {
    %c0_i32 = arith.constant 0 : i32
    %c0_i32_0 = arith.constant 0 : i32
    %c0_i32_1 = arith.constant 0 : i32
    return %c0_i32, %c0_i32_0 : i32, i32
  }
  func.func @transform_3(%arg0: i32) -> (i32, i32) {
    %c0_i32 = arith.constant 0 : i32
    %c0_i32_0 = arith.constant 0 : i32
    %c0_i32_1 = arith.constant 0 : i32
    return %c0_i32, %c0_i32_0 : i32, i32
  }
  func.func @transform_4(%arg0: i32) -> (i32, i32) {
    %c0_i32 = arith.constant 0 : i32
    %c0_i32_0 = arith.constant 0 : i32
    %c0_i32_1 = arith.constant 0 : i32
    return %c0_i32, %c0_i32_0 : i32, i32
  }
  func.func @transform_5(%arg0: i32) -> (i32, i32, i32) {
    %c0_i32 = arith.constant 0 : i32
    %c0_i32_0 = arith.constant 0 : i32
    %c0_i32_1 = arith.constant 0 : i32
    return %arg0, %c0_i32, %c0_i32_0 : i32, i32, i32
  }
  func.func @transform_6(%arg0: i32) -> (i32, i32, i32) {
    %c0_i32 = arith.constant 0 : i32
    %c0_i32_0 = arith.constant 0 : i32
    %c0_i32_1 = arith.constant 0 : i32
    %c0_i32_2 = arith.constant 0 : i32
    return %c0_i32, %c0_i32_0, %c0_i32_1 : i32, i32, i32
  }
  func.func @transform_7(%arg0: i32) -> (i32, i32) {
    %c0_i32 = arith.constant 0 : i32
    %c0_i32_0 = arith.constant 0 : i32
    return %c0_i32, %arg0 : i32, i32
  }
}

</mosaic_0001>

<llo_original>
// kernel: qa_forward.1
$region0: #{qa_forward.1}
  #allocation0 [shape = 'u32[]', space=smem, size = 0x4, offset = 0x4, fixed_abs, tag = 'smem constant byte address 0x4 - core index']
  #allocation1 [shape = 'u32[144,128]{1,0:T(1,128)}', space=vmem, size = 0x12000, scoped, tag = 'internal scratch']
  %s0 = inlined_call_operand.vmem [shape: bf16[8,128], index: 0, kind: input, shape index: {}]
  %s1 = inlined_call_operand.vmem [shape: bf16[8,128], index: 1, kind: input, shape index: {}]
  %s2 = inlined_call_operand.vmem [shape: bf16[128,128], index: 2, kind: input, shape index: {}]
  %s3 = inlined_call_operand.vmem [shape: bf16[128,128], index: 3, kind: input, shape index: {}]
  %s4 = inlined_call_operand.vmem [shape: f32[1,128], index: 4, kind: input, shape index: {}]
  %s5 = inlined_call_operand.vmem [shape: bf16[1,128,128], index: 5, kind: input, shape index: {}]
  %s6 = inlined_call_operand.vmem [shape: f32[1,1,128], index: 6, kind: input, shape index: {}]
  %s7 = inlined_call_operand.vmem [shape: bf16[8,128], index: 7, kind: output, shape index: {}]
  %s8 = sld [smem:[#allocation0]]
  $region38: #{qa_forward.1} parent=0
    _
  %s10 = ssub.s32 1, %s8
  %s11 = scalar_select 0, %s10, %s8
  // Predicated region
  $region2: #{qa_forward.1} parent=0 // pred_check
    _
  $region3: #{qa_forward.1} parent=0 // pred_check_branch
    %13 = sbr.rel (0) target = $region5
  $region4: #{qa_forward.1} parent=0 // pred_region
    _
  $region5: #{qa_forward.1} parent=0 // pred_fallthru
    _
  // Predicated region
  $region6: #{qa_forward.1} parent=0 // pred_check
    _
  $region7: #{qa_forward.1} parent=0 // pred_check_branch
    %15 = sbr.rel (0) target = $region9
  $region8: #{qa_forward.1} parent=0 // pred_region
    _
  $region9: #{qa_forward.1} parent=0 // pred_fallthru
    _
  // Predicated region
  $region10: #{qa_forward.1} parent=0 // pred_check
    _
  $region11: #{qa_forward.1} parent=0 // pred_check_branch
    %17 = sbr.rel (0) target = $region13
  $region12: #{qa_forward.1} parent=0 // pred_region
    _
  $region13: #{qa_forward.1} parent=0 // pred_fallthru
    _
  // Predicated region
  $region14: #{qa_forward.1} parent=0 // pred_check
    _
  $region15: #{qa_forward.1} parent=0 // pred_check_branch
    %19 = sbr.rel (0) target = $region17
  $region16: #{qa_forward.1} parent=0 // pred_region
    _
  $region17: #{qa_forward.1} parent=0 // pred_fallthru
    _
  // Predicated region
  $region18: #{qa_forward.1} parent=0 // pred_check
    _
  $region19: #{qa_forward.1} parent=0 // pred_check_branch
    %21 = sbr.rel (0) target = $region21
  $region20: #{qa_forward.1} parent=0 // pred_region
    _
  $region21: #{qa_forward.1} parent=0 // pred_fallthru
    _
  // Predicated region
  $region22: #{qa_forward.1} parent=0 // pred_check
    _
  $region23: #{qa_forward.1} parent=0 // pred_check_branch
    %23 = sbr.rel (0) target = $region25
  $region24: #{qa_forward.1} parent=0 // pred_region
    _
  $region25: #{qa_forward.1} parent=0 // pred_fallthru
    _
  // Predicated region
  $region26: #{qa_forward.1} parent=0 // pred_check
    _
  $region27: #{qa_forward.1} parent=0 // pred_check_branch
    %25 = sbr.rel (0) target = $region29
  $region28: #{qa_forward.1} parent=0 // pred_region
    _
  $region29: #{qa_forward.1} parent=0 // pred_fallthru
    _
  %v27 = vld [vmem:[%s0] sm:$0xf]
  %v28 = vld [vmem:[%s2] sm:$0xf]
  %v29 = vld [vmem:[%s2 + $0x4] sm:$0xf]
  %v30 = vld [vmem:[%s2 + $0x8] sm:$0xf]
  %v31 = vld [vmem:[%s2 + $0xc] sm:$0xf]
  %v32 = vld [vmem:[%s2 + $0x10] sm:$0xf]
  %v33 = vld [vmem:[%s2 + $0x14] sm:$0xf]
  %v34 = vld [vmem:[%s2 + $0x18] sm:$0xf]
  %v35 = vld [vmem:[%s2 + $0x1c] sm:$0xf]
  %v36 = vld [vmem:[%s2 + $0x20] sm:$0xf]
  %v37 = vld [vmem:[%s2 + $0x24] sm:$0xf]
  %v38 = vld [vmem:[%s2 + $0x28] sm:$0xf]
  %v39 = vld [vmem:[%s2 + $0x2c] sm:$0xf]
  %v40 = vld [vmem:[%s2 + $0x30] sm:$0xf]
  %v41 = vld [vmem:[%s2 + $0x34] sm:$0xf]
  %v42 = vld [vmem:[%s2 + $0x38] sm:$0xf]
  %v43 = vld [vmem:[%s2 + $0x3c] sm:$0xf]
  %v44 = vld [vmem:[%s1] sm:$0xf]
  %v45 = vld [vmem:[%s3] sm:$0xf]
  %v46 = vld [vmem:[%s3 + $0x4] sm:$0xf]
  %v47 = vld [vmem:[%s3 + $0x8] sm:$0xf]
  %v48 = vld [vmem:[%s3 + $0xc] sm:$0xf]
  %v49 = vld [vmem:[%s3 + $0x10] sm:$0xf]
  %v50 = vld [vmem:[%s3 + $0x14] sm:$0xf]
  %v51 = vld [vmem:[%s3 + $0x18] sm:$0xf]
  %v52 = vld [vmem:[%s3 + $0x1c] sm:$0xf]
  %v53 = vld [vmem:[%s3 + $0x20] sm:$0xf]
  %v54 = vld [vmem:[%s3 + $0x24] sm:$0xf]
  %v55 = vld [vmem:[%s3 + $0x28] sm:$0xf]
  %v56 = vld [vmem:[%s3 + $0x2c] sm:$0xf]
  %v57 = vld [vmem:[%s3 + $0x30] sm:$0xf]
  %v58 = vld [vmem:[%s3 + $0x34] sm:$0xf]
  %v59 = vld [vmem:[%s3 + $0x38] sm:$0xf]
  %v60 = vld [vmem:[%s3 + $0x3c] sm:$0xf]
  %v77 = vunpack.c.l.b16 %v45
  %v78 = vunpack.c.l.b16 %v46
  %v79 = vunpack.c.l.b16 %v47
  %v80 = vunpack.c.l.b16 %v48
  %v81 = vunpack.c.l.b16 %v49
  %v82 = vunpack.c.l.b16 %v50
  %v83 = vunpack.c.l.b16 %v51
  %v84 = vunpack.c.l.b16 %v52
  %v85 = vunpack.c.l.b16 %v53
  %v86 = vunpack.c.l.b16 %v54
  %v87 = vunpack.c.l.b16 %v55
  %v88 = vunpack.c.l.b16 %v56
  %v89 = vunpack.c.l.b16 %v57
  %v90 = vunpack.c.l.b16 %v58
  %v91 = vunpack.c.l.b16 %v59
  %v92 = vunpack.c.l.b16 %v60
  %v93 = vpack.c.b16 %v78, %v77
  %v94 = vpack.c.b16 %v80, %v79
  %v95 = vpack.c.b16 %v82, %v81
  %v96 = vpack.c.b16 %v84, %v83
  %v97 = vpack.c.b16 %v86, %v85
  %v98 = vpack.c.b16 %v88, %v87
  %v99 = vpack.c.b16 %v90, %v89
  %v100 = vpack.c.b16 %v92, %v91
  %109 = vmatprep.subr.bf16.mxu0 0
  %110 = vmatpush1.bf16.msra.mxu0 %v93
  %111 = vmatprep.subr.bf16.mxu0 0
  %112 = vmatpush1.bf16.msra.mxu0 %v94
  %113 = vmatprep.subr.bf16.mxu0 0
  %114 = vmatpush1.bf16.msra.mxu0 %v95
  %115 = vmatprep.subr.bf16.mxu0 0
  %116 = vmatpush1.bf16.msra.mxu0 %v96
  %117 = vmatprep.subr.bf16.mxu0 0
  %118 = vmatpush1.bf16.msra.mxu0 %v97
  %119 = vmatprep.subr.bf16.mxu0 0
  %120 = vmatpush1.bf16.msra.mxu0 %v98
  %121 = vmatprep.subr.bf16.mxu0 0
  %122 = vmatpush1.bf16.msra.mxu0 %v99
  %123 = vmatprep.subr.bf16.mxu0 0
  %124 = vmatpush1.bf16.msra.mxu0 %v100
  %125 = vmatprep.subr.bf16.mxu0 0
  %126 = vmatpush1.bf16.msra.mxu0 0
  %127 = vmatprep.subr.bf16.mxu0 0
  %128 = vmatpush1.bf16.msra.mxu0 0
  %129 = vmatprep.subr.bf16.mxu0 0
  %130 = vmatpush1.bf16.msra.mxu0 0
  %131 = vmatprep.subr.bf16.mxu0 0
  %132 = vmatpush1.bf16.msra.mxu0 0
  %133 = vmatprep.subr.bf16.mxu0 0
  %134 = vmatpush1.bf16.msra.mxu0 0
  %135 = vmatprep.subr.bf16.mxu0 0
  %136 = vmatpush1.bf16.msra.mxu0 0
  %137 = vmatprep.subr.bf16.mxu0 0
  %138 = vmatpush1.bf16.msra.mxu0 0
  %139 = vmatprep.subr.bf16.mxu0 0
  %140 = vmatpush1.bf16.msra.mxu0 0
  %141 = vmatprep.mubr.bf16.mxu0 0
  %142 = vmatmul.mubr.bf16.gmra.mrb[0].mxu0 %v44
  %v143 = vpop.f32.mrb[0].mxu0
  %v144 = vadd.f32 0.0, %v143
  %v145 = vpop.f32.mrb[0].mxu0
  %v146 = vpop.f32.mrb[0].mxu0
  %v147 = vpop.f32.mrb[0].mxu0
  %148 = vdwg.mxu0
  %v165 = vunpack.c.l.b16 %v28
  %v166 = vunpack.c.l.b16 %v29
  %v167 = vunpack.c.l.b16 %v30
  %v168 = vunpack.c.l.b16 %v31
  %v169 = vunpack.c.l.b16 %v32
  %v170 = vunpack.c.l.b16 %v33
  %v171 = vunpack.c.l.b16 %v34
  %v172 = vunpack.c.l.b16 %v35
  %v173 = vunpack.c.l.b16 %v36
  %v174 = vunpack.c.l.b16 %v37
  %v175 = vunpack.c.l.b16 %v38
  %v176 = vunpack.c.l.b16 %v39
  %v177 = vunpack.c.l.b16 %v40
  %v178 = vunpack.c.l.b16 %v41
  %v179 = vunpack.c.l.b16 %v42
  %v180 = vunpack.c.l.b16 %v43
  %v181 = vpack.c.b16 %v166, %v165
  %v182 = vpack.c.b16 %v168, %v167
  %v183 = vpack.c.b16 %v170, %v169
  %v184 = vpack.c.b16 %v172, %v171
  %v185 = vpack.c.b16 %v174, %v173
  %v186 = vpack.c.b16 %v176, %v175
  %v187 = vpack.c.b16 %v178, %v177
  %v188 = vpack.c.b16 %v180, %v179
  %197 = vmatprep.subr.bf16.mxu0 0
  %198 = vmatpush1.bf16.msra.mxu0 %v181
  %199 = vmatprep.subr.bf16.mxu0 0
  %200 = vmatpush1.bf16.msra.mxu0 %v182
  %201 = vmatprep.subr.bf16.mxu0 0
  %202 = vmatpush1.bf16.msra.mxu0 %v183
  %203 = vmatprep.subr.bf16.mxu0 0
  %204 = vmatpush1.bf16.msra.mxu0 %v184
  %205 = vmatprep.subr.bf16.mxu0 0
  %206 = vmatpush1.bf16.msra.mxu0 %v185
  %207 = vmatprep.subr.bf16.mxu0 0
  %208 = vmatpush1.bf16.msra.mxu0 %v186
  %209 = vmatprep.subr.bf16.mxu0 0
  %210 = vmatpush1.bf16.msra.mxu0 %v187
  %211 = vmatprep.subr.bf16.mxu0 0
  %212 = vmatpush1.bf16.msra.mxu0 %v188
  %213 = vmatprep.subr.bf16.mxu0 0
  %214 = vmatpush1.bf16.msra.mxu0 0
  %215 = vmatprep.subr.bf16.mxu0 0
  %216 = vmatpush1.bf16.msra.mxu0 0
  %217 = vmatprep.subr.bf16.mxu0 0
  %218 = vmatpush1.bf16.msra.mxu0 0
  %219 = vmatprep.subr.bf16.mxu0 0
  %220 = vmatpush1.bf16.msra.mxu0 0
  %221 = vmatprep.subr.bf16.mxu0 0
  %222 = vmatpush1.bf16.msra.mxu0 0
  %223 = vmatprep.subr.bf16.mxu0 0
  %224 = vmatpush1.bf16.msra.mxu0 0
  %225 = vmatprep.subr.bf16.mxu0 0
  %226 = vmatpush1.bf16.msra.mxu0 0
  %227 = vmatprep.subr.bf16.mxu0 0
  %228 = vmatpush1.bf16.msra.mxu0 0
  %229 = vmatprep.mubr.bf16.mxu0 0
  %230 = vmatmul.mubr.bf16.gmra.mrb[0].mxu0 %v27
  %v231 = vpop.f32.mrb[0].mxu0
  %v232 = vadd.f32 %v144, %v231
  %v233 = vpop.f32.mrb[0].mxu0
  %v234 = vpop.f32.mrb[0].mxu0
  %v235 = vpop.f32.mrb[0].mxu0
  %236 = vdwg.mxu0
  %v237 = vld [vmem:[%s4] sm:$0x1]
  %v239 = vlaneseq
  %v240 = vshrl.u32 %v239, 7
  %v241 = vsub.s32 0, %v240
  %v242 = vrot.slane %v237, %v241
  %v244 = vadd.f32 %v232, %v242
  %v245 = vmax.f32 %v244, 0.0
  %v246 = vpack.c.bf16 %v245, %v245
  %v247 = vld [vmem:[%s5] sm:$0xf]
  %v248 = vld [vmem:[%s5 + $0x4] sm:$0xf]
  %v249 = vld [vmem:[%s5 + $0x8] sm:$0xf]
  %v250 = vld [vmem:[%s5 + $0xc] sm:$0xf]
  %v251 = vld [vmem:[%s5 + $0x10] sm:$0xf]
  %v252 = vld [vmem:[%s5 + $0x14] sm:$0xf]
  %v253 = vld [vmem:[%s5 + $0x18] sm:$0xf]
  %v254 = vld [vmem:[%s5 + $0x1c] sm:$0xf]
  %v255 = vld [vmem:[%s5 + $0x20] sm:$0xf]
  %v256 = vld [vmem:[%s5 + $0x24] sm:$0xf]
  %v257 = vld [vmem:[%s5 + $0x28] sm:$0xf]
  %v258 = vld [vmem:[%s5 + $0x2c] sm:$0xf]
  %v259 = vld [vmem:[%s5 + $0x30] sm:$0xf]
  %v260 = vld [vmem:[%s5 + $0x34] sm:$0xf]
  %v261 = vld [vmem:[%s5 + $0x38] sm:$0xf]
  %v262 = vld [vmem:[%s5 + $0x3c] sm:$0xf]
  %v263 = vld [vmem:[%s6] sm:$0x1]
  %v265 = vlaneseq
  %v266 = vshrl.u32 %v265, 7
  %v267 = vsub.s32 0, %v266
  %v268 = vrot.slane %v263, %v267
  %v286 = vunpack.c.l.b16 %v247
  %v287 = vunpack.c.l.b16 %v248
  %v288 = vunpack.c.l.b16 %v249
  %v289 = vunpack.c.l.b16 %v250
  %v290 = vunpack.c.l.b16 %v251
  %v291 = vunpack.c.l.b16 %v252
  %v292 = vunpack.c.l.b16 %v253
  %v293 = vunpack.c.l.b16 %v254
  %v294 = vunpack.c.l.b16 %v255
  %v295 = vunpack.c.l.b16 %v256
  %v296 = vunpack.c.l.b16 %v257
  %v297 = vunpack.c.l.b16 %v258
  %v298 = vunpack.c.l.b16 %v259
  %v299 = vunpack.c.l.b16 %v260
  %v300 = vunpack.c.l.b16 %v261
  %v301 = vunpack.c.l.b16 %v262
  %v302 = vpack.c.b16 %v287, %v286
  %v303 = vpack.c.b16 %v289, %v288
  %v304 = vpack.c.b16 %v291, %v290
  %v305 = vpack.c.b16 %v293, %v292
  %v306 = vpack.c.b16 %v295, %v294
  %v307 = vpack.c.b16 %v297, %v296
  %v308 = vpack.c.b16 %v299, %v298
  %v309 = vpack.c.b16 %v301, %v300
  %318 = vmatprep.subr.bf16.mxu0 0
  %319 = vmatpush1.bf16.msra.mxu0 %v302
  %320 = vmatprep.subr.bf16.mxu0 0
  %321 = vmatpush1.bf16.msra.mxu0 %v303
  %322 = vmatprep.subr.bf16.mxu0 0
  %323 = vmatpush1.bf16.msra.mxu0 %v304
  %324 = vmatprep.subr.bf16.mxu0 0
  %325 = vmatpush1.bf16.msra.mxu0 %v305
  %326 = vmatprep.subr.bf16.mxu0 0
  %327 = vmatpush1.bf16.msra.mxu0 %v306
  %328 = vmatprep.subr.bf16.mxu0 0
  %329 = vmatpush1.bf16.msra.mxu0 %v307
  %330 = vmatprep.subr.bf16.mxu0 0
  %331 = vmatpush1.bf16.msra.mxu0 %v308
  %332 = vmatprep.subr.bf16.mxu0 0
  %333 = vmatpush1.bf16.msra.mxu0 %v309
  %334 = vmatprep.subr.bf16.mxu0 0
  %335 = vmatpush1.bf16.msra.mxu0 0
  %336 = vmatprep.subr.bf16.mxu0 0
  %337 = vmatpush1.bf16.msra.mxu0 0
  %338 = vmatprep.subr.bf16.mxu0 0
  %339 = vmatpush1.bf16.msra.mxu0 0
  %340 = vmatprep.subr.bf16.mxu0 0
  %341 = vmatpush1.bf16.msra.mxu0 0
  %342 = vmatprep.subr.bf16.mxu0 0
  %343 = vmatpush1.bf16.msra.mxu0 0
  %344 = vmatprep.subr.bf16.mxu0 0
  %345 = vmatpush1.bf16.msra.mxu0 0
  %346 = vmatprep.subr.bf16.mxu0 0
  %347 = vmatpush1.bf16.msra.mxu0 0
  %348 = vmatprep.subr.bf16.mxu0 0
  %349 = vmatpush1.bf16.msra.mxu0 0
  %350 = vmatprep.mubr.bf16.mxu0 0
  %351 = vmatmul.mubr.bf16.gmra.mrb[0].mxu0 %v246
  %v352 = vpop.f32.mrb[0].mxu0
  %v353 = vadd.f32 %v268, %v352
  %v354 = vpop.f32.mrb[0].mxu0
  %v355 = vpop.f32.mrb[0].mxu0
  %v356 = vpop.f32.mrb[0].mxu0
  %357 = vdwg.mxu0
  %v358 = vpack.c.bf16 %v353, %v353
  %359 = vst [vmem:[%s7] sm:$0xf] %v358
  // Predicated region
  $region30: #{qa_forward.1} parent=0 // pred_check
    _
  $region31: #{qa_forward.1} parent=0 // pred_check_branch
    %361 = sbr.rel (0) target = $region33
  $region32: #{qa_forward.1} parent=0 // pred_region
    _
  $region33: #{qa_forward.1} parent=0 // pred_fallthru
    _
  // Predicated region
  $region34: #{qa_forward.1} parent=0 // pred_check
    _
  $region35: #{qa_forward.1} parent=0 // pred_check_branch
    %363 = sbr.rel (0) target = $region37
  $region36: #{qa_forward.1} parent=0 // pred_region
    _
  $region37: #{qa_forward.1} parent=0 // pred_fallthru
    _

</llo_original>
